<compile_context>
chip_gen: v6e
topology: v6e:2x2x1
jax: 0.10.0
libtpu: 0.0.40
codegen_flags: <defaults>
</compile_context>

<pallas_src>
import functools
import math

import jax
import jax.numpy as jnp
from jax.experimental import pallas as pl
from jax.experimental.pallas import tpu as pltpu


def _pose_projector_kernel(pd, x_ref, wxc_ref, bxc_ref,
                           w2_ref, b2_ref, w3_ref, b3_ref, z_ref, v_ref):
    """pd = P * hidden_dim (packed hidden width)."""
    x = x_ref[...]                                                     # (tm, PD)

    # Fused first matmul: x @ [W1' | Wv'] + [b1' | bv']  -> (tm, PD + P*K)
    xc = jnp.dot(x, wxc_ref[...], preferred_element_type=jnp.float32)
    xc = xc + bxc_ref[...]

    h1 = jnp.maximum(xc[:, :pd], 0.0).astype(w2_ref.dtype)            # (tm, PD)
    v = xc[:, pd:]                                                     # (tm, P*K)

    # Z_projector layers 2 and 3 (block-diagonal packed weights).
    h2 = jnp.dot(h1, w2_ref[...], preferred_element_type=jnp.float32)
    h2 = jnp.maximum(h2 + b2_ref[...], 0.0).astype(w3_ref.dtype)       # (tm, PD)
    z = jnp.dot(h2, w3_ref[...], preferred_element_type=jnp.float32)
    z = z + b3_ref[...]                                                # (tm, P*2K)

    # Two dense, lane-contiguous stores (no concat temp, no wrapper re-slice).
    z_ref[...] = z.astype(z_ref.dtype)
    v_ref[...] = v.astype(v_ref.dtype)


def pose_projector_forward(hs, params, *, tm=4096):
    """hs: (..., hidden_dim).  Returns (Z, V) with last dims (2K,) and (K,)."""
    w1, b1, w2, b2, w3, b3, wv, bv = params
    D = hs.shape[-1]
    out_z = w3.shape[1]          # 2K
    out_v = wv.shape[1]          # K

    lead_shape = hs.shape[:-1]
    M = int(math.prod(lead_shape)) if lead_shape else 1
    if M == 0:                   # empty leading dim: nothing to compute
        return (jnp.zeros((*lead_shape, out_z), hs.dtype),
                jnp.zeros((*lead_shape, out_v), hs.dtype))

    # ---- Row-packing factor: pack P rows into the 128-lane contraction. ----
    P0 = max(1, 128 // D) if (D <= 128 and 128 % D == 0) else 1
    P = 1
    for p in range(P0, 0, -1):
        if M % p == 0:
            P = p
            break
    Mg = M // P
    PD = P * D
    pKz = P * out_z
    pKv = P * out_v

    # ---- Block-diagonal weight / tiled bias packing (one-time wrapper cost).
    if P > 1:
        eye = jnp.eye(P, dtype=w1.dtype)
        bd = lambda w: jnp.kron(eye, w)
        tb = lambda b: jnp.tile(b, (1, P))
    else:
        bd = lambda w: w
        tb = lambda b: b

    # Fuse the two x-LHS matmuls (Z layer-1 and V_projector) into one MXU pass.
    wxc = jnp.concatenate([bd(w1), bd(wv)], axis=1)    # (PD, PD + P*K)
    bxc = jnp.concatenate([tb(b1), tb(bv)], axis=1)    # (1,  PD + P*K)
    w2p, b2p = bd(w2), tb(b2)                          # (PD, PD), (1, PD)
    w3p, b3p = bd(w3), tb(b3)                          # (PD, P*2K), (1, P*2K)

    xg = hs.reshape(Mg, PD)                            # free (row-major) reshape

    # ---- Row-tile selection (in packed group-rows). ----
    itemsize = jnp.dtype(hs.dtype).itemsize
    per_row = (PD * itemsize * 2                       # x tile, double-buffered
               + (pKz + pKv) * itemsize * 2            # z/v tiles, double-buffered
               + (PD + pKv + PD + PD + pKz) * 4)       # f32 body intermediates
    vmem_budget = 12 * 1024 * 1024                     # safe on v5e/v6e/v7x defaults
    tm_budget = max(8, (vmem_budget // per_row) // 8 * 8)

    tm_g = max(8, (max(int(tm), 8) // P) // 8 * 8)
    tm_g = min(tm_g, tm_budget)
    if Mg < 8:
        tm_eff = Mg                                    # single block = full dim
    else:
        half = (Mg // 2) // 8 * 8                      # aim for >= 2 grid steps (v7x)
        tm_eff = min(tm_g, half) if half >= 8 else min(tm_g, (Mg // 8) * 8)
    grid = (pl.cdiv(Mg, tm_eff),)

    full = lambda a: pl.BlockSpec(a.shape, lambda i: (0, 0))

    z2d, v2d = pl.pallas_call(
        functools.partial(_pose_projector_kernel, PD),
        out_shape=(jax.ShapeDtypeStruct((Mg, pKz), hs.dtype),
                   jax.ShapeDtypeStruct((Mg, pKv), hs.dtype)),
        grid_spec=pl.GridSpec(
            grid=grid,
            in_specs=[
                pl.BlockSpec((tm_eff, PD), lambda i: (i, 0)),   # packed x tile
                full(wxc), full(bxc),
                full(w2p), full(b2p),
                full(w3p), full(b3p),
            ],
            out_specs=(pl.BlockSpec((tm_eff, pKz), lambda i: (i, 0)),
                       pl.BlockSpec((tm_eff, pKv), lambda i: (i, 0))),
        ),
        compiler_params=pltpu.CompilerParams(
            dimension_semantics=("parallel",)),
    )(xg, wxc, bxc, w2p, b2p, w3p, b3p)

    # Free reshapes: packed layout is already the row-major (M, 2K)/(M, K).
    Z = z2d.reshape(*lead_shape, out_z)
    V = v2d.reshape(*lead_shape, out_v)
    return Z, V


def init_pose_projector_params(key, hidden_dim=32, num_body_points=17,
                               dtype=jnp.float32):
    """Deterministic synthetic params matching PoseProjector.__init__ semantics.

    PyTorch nn.Linear default init: U(-1/sqrt(fan_in), 1/sqrt(fan_in)) for both
    weight and bias.  Then:
      - V_projector.bias  <- 0
      - Z_projector last layer weight/bias <- 0
    Weights here are (in, out) = PyTorch weight transposed.
    """
    ks = jax.random.split(key, 8)

    def lin(kw, kb, fan_in, fan_out):
        bound = 1.0 / math.sqrt(fan_in)
        w = jax.random.uniform(kw, (fan_in, fan_out), dtype, -bound, bound)
        b = jax.random.uniform(kb, (1, fan_out), dtype, -bound, bound)
        return w, b

    # Z_projector = MLP(hidden, hidden, 2K, 3)
    w1, b1 = lin(ks[0], ks[1], hidden_dim, hidden_dim)
    w2, b2 = lin(ks[2], ks[3], hidden_dim, hidden_dim)
    w3 = jnp.zeros((hidden_dim, num_body_points * 2), dtype)   # constant_(0)
    b3 = jnp.zeros((1, num_body_points * 2), dtype)            # constant_(0)
    # V_projector = Linear(hidden, K), bias zeroed.
    wv, _ = lin(ks[4], ks[5], hidden_dim, num_body_points)
    bv = jnp.zeros((1, num_body_points), dtype)                # constant_(0)
    return (w1, b1, w2, b2, w3, b3, wv, bv)


def _reference_forward(hs, params):
    """Plain-JAX reference of the PyTorch forward for validation."""
    w1, b1, w2, b2, w3, b3, wv, bv = params
    h1 = jnp.maximum(hs @ w1 + b1[0], 0.0)
    h2 = jnp.maximum(h1 @ w2 + b2[0], 0.0)
    Z = h2 @ w3 + b3[0]
    V = hs @ wv + bv[0]
    return Z, V


if __name__ == "__main__":
    key = jax.random.PRNGKey(0)
    k_param, k_x = jax.random.split(key)

    hidden_dim = 32
    num_body_points = 17
    bs, nq = 2, 8                      # hs: (bs, nq, hidden_dim)

    params = init_pose_projector_params(k_param, hidden_dim, num_body_points)
    hs = jax.random.normal(k_x, (bs, nq, hidden_dim), jnp.float32)

    Z, V = pose_projector_forward(hs, params)
    Z, V = jax.block_until_ready((Z, V))

    # Sanity check against plain-JAX reference.
    Z_ref, V_ref = _reference_forward(hs, params)
    assert Z.shape == (bs, nq, num_body_points * 2)
    assert V.shape == (bs, nq, num_body_points)
    assert jnp.allclose(Z, Z_ref, atol=1e-5, rtol=1e-5)
    assert jnp.allclose(V, V_ref, atol=1e-5, rtol=1e-5)

    print("KERNEL_OK")
</pallas_src>

<mosaic_0001>
module attributes {stable_mosaic.version = 11 : i64} {
  func.func @_pose_projector_kernel(%arg0: i32, %arg1: memref<4x128xf32, #tpu.memory_space<vmem>>, %arg2: memref<128x196xf32, #tpu.memory_space<vmem>>, %arg3: memref<1x196xf32, #tpu.memory_space<vmem>>, %arg4: memref<128x128xf32, #tpu.memory_space<vmem>>, %arg5: memref<1x128xf32, #tpu.memory_space<vmem>>, %arg6: memref<128x136xf32, #tpu.memory_space<vmem>>, %arg7: memref<1x136xf32, #tpu.memory_space<vmem>>, %arg8: memref<4x136xf32, #tpu.memory_space<vmem>>, %arg9: memref<4x68xf32, #tpu.memory_space<vmem>>) attributes {dimension_semantics = [#tpu.dimension_semantics<parallel>], iteration_bounds = array<i64: 1>, scalar_prefetch = 0 : i64, scratch_operands = 0 : i64, tpu.core_type = #tpu.core_type<tc>, window_params = [{transform_indices = @transform_0, window_bounds = array<i64: 4, 128>}, {pipeline_mode = #tpu.pipeline_mode<synchronous>, transform_indices = @transform_1, window_bounds = array<i64: 128, 196>}, {pipeline_mode = #tpu.pipeline_mode<synchronous>, transform_indices = @transform_2, window_bounds = array<i64: 1, 196>}, {pipeline_mode = #tpu.pipeline_mode<synchronous>, transform_indices = @transform_3, window_bounds = array<i64: 128, 128>}, {pipeline_mode = #tpu.pipeline_mode<synchronous>, transform_indices = @transform_4, window_bounds = array<i64: 1, 128>}, {pipeline_mode = #tpu.pipeline_mode<synchronous>, transform_indices = @transform_5, window_bounds = array<i64: 128, 136>}, {pipeline_mode = #tpu.pipeline_mode<synchronous>, transform_indices = @transform_6, window_bounds = array<i64: 1, 136>}, {transform_indices = @transform_7, window_bounds = array<i64: 4, 136>}, {transform_indices = @transform_8, window_bounds = array<i64: 4, 68>}]} {
    %c0 = arith.constant 0 : index
    %c0_0 = arith.constant 0 : index
    %0 = vector.load %arg1[%c0, %c0_0] : memref<4x128xf32, #tpu.memory_space<vmem>>, vector<4x128xf32>
    %c0_1 = arith.constant 0 : index
    %c0_2 = arith.constant 0 : index
    %1 = vector.load %arg2[%c0_1, %c0_2] : memref<128x196xf32, #tpu.memory_space<vmem>>, vector<128x196xf32>
    %cst = arith.constant dense<0.000000e+00> : vector<4x196xf32>
    %2 = tpu.matmul %0, %1, %cst {dimension_numbers = #tpu.dot_dimension_numbers<[1], [0], [0], [1], [0, 0, 1, 1], [], []>} : vector<4x128xf32>, vector<128x196xf32>, vector<4x196xf32> -> vector<4x196xf32>
    %c0_3 = arith.constant 0 : index
    %c0_4 = arith.constant 0 : index
    %3 = vector.load %arg3[%c0_3, %c0_4] : memref<1x196xf32, #tpu.memory_space<vmem>>, vector<1x196xf32>
    %4 = vector.broadcast %3 : vector<1x196xf32> to vector<4x196xf32>
    %5 = arith.addf %2, %4 : vector<4x196xf32>
    %6 = vector.extract_strided_slice %5 {offsets = [0, 0], sizes = [4, 128], strides = [1, 1]} : vector<4x196xf32> to vector<4x128xf32>
    %cst_5 = arith.constant 0.000000e+00 : f32
    %7 = vector.broadcast %cst_5 : f32 to vector<4x128xf32>
    %8 = arith.maximumf %6, %7 : vector<4x128xf32>
    %9 = vector.extract_strided_slice %5 {offsets = [0, 128], sizes = [4, 68], strides = [1, 1]} : vector<4x196xf32> to vector<4x68xf32>
    %c0_6 = arith.constant 0 : index
    %c0_7 = arith.constant 0 : index
    %10 = vector.load %arg4[%c0_6, %c0_7] : memref<128x128xf32, #tpu.memory_space<vmem>>, vector<128x128xf32>
    %cst_8 = arith.constant dense<0.000000e+00> : vector<4x128xf32>
    %11 = tpu.matmul %8, %10, %cst_8 {dimension_numbers = #tpu.dot_dimension_numbers<[1], [0], [0], [1], [0, 0, 1, 1], [], []>} : vector<4x128xf32>, vector<128x128xf32>, vector<4x128xf32> -> vector<4x128xf32>
    %c0_9 = arith.constant 0 : index
    %c0_10 = arith.constant 0 : index
    %12 = vector.load %arg5[%c0_9, %c0_10] : memref<1x128xf32, #tpu.memory_space<vmem>>, vector<1x128xf32>
    %13 = vector.broadcast %12 : vector<1x128xf32> to vector<4x128xf32>
    %14 = arith.addf %11, %13 : vector<4x128xf32>
    %cst_11 = arith.constant 0.000000e+00 : f32
    %15 = vector.broadcast %cst_11 : f32 to vector<4x128xf32>
    %16 = arith.maximumf %14, %15 : vector<4x128xf32>
    %c0_12 = arith.constant 0 : index
    %c0_13 = arith.constant 0 : index
    %17 = vector.load %arg6[%c0_12, %c0_13] : memref<128x136xf32, #tpu.memory_space<vmem>>, vector<128x136xf32>
    %cst_14 = arith.constant dense<0.000000e+00> : vector<4x136xf32>
    %18 = tpu.matmul %16, %17, %cst_14 {dimension_numbers = #tpu.dot_dimension_numbers<[1], [0], [0], [1], [0, 0, 1, 1], [], []>} : vector<4x128xf32>, vector<128x136xf32>, vector<4x136xf32> -> vector<4x136xf32>
    %c0_15 = arith.constant 0 : index
    %c0_16 = arith.constant 0 : index
    %19 = vector.load %arg7[%c0_15, %c0_16] : memref<1x136xf32, #tpu.memory_space<vmem>>, vector<1x136xf32>
    %20 = vector.broadcast %19 : vector<1x136xf32> to vector<4x136xf32>
    %21 = arith.addf %18, %20 : vector<4x136xf32>
    %c0_17 = arith.constant 0 : index
    %c0_18 = arith.constant 0 : index
    %22 = vector.load %arg8[%c0_17, %c0_18] : memref<4x136xf32, #tpu.memory_space<vmem>>, vector<4x136xf32>
    tpu.vector_store %arg8[%c0_17, %c0_18], %21 {strides = array<i32>} : memref<4x136xf32, #tpu.memory_space<vmem>>, vector<4x136xf32>,
    %c0_19 = arith.constant 0 : index
    %c0_20 = arith.constant 0 : index
    %23 = vector.load %arg9[%c0_19, %c0_20] : memref<4x68xf32, #tpu.memory_space<vmem>>, vector<4x68xf32>
    tpu.vector_store %arg9[%c0_19, %c0_20], %9 {strides = array<i32>} : memref<4x68xf32, #tpu.memory_space<vmem>>, vector<4x68xf32>,
    return
  }
  func.func @transform_0(%arg0: i32) -> (i32, i32) {
    %c0_i32 = arith.constant 0 : i32
    %c0_i32_0 = arith.constant 0 : i32
    return %arg0, %c0_i32 : i32, i32
  }
  func.func @transform_1(%arg0: i32) -> (i32, i32) {
    %c0_i32 = arith.constant 0 : i32
    %c0_i32_0 = arith.constant 0 : i32
    %c0_i32_1 = arith.constant 0 : i32
    return %c0_i32, %c0_i32_0 : i32, i32
  }
  func.func @transform_2(%arg0: i32) -> (i32, i32) {
    %c0_i32 = arith.constant 0 : i32
    %c0_i32_0 = arith.constant 0 : i32
    %c0_i32_1 = arith.constant 0 : i32
    return %c0_i32, %c0_i32_0 : i32, i32
  }
  func.func @transform_3(%arg0: i32) -> (i32, i32) {
    %c0_i32 = arith.constant 0 : i32
    %c0_i32_0 = arith.constant 0 : i32
    %c0_i32_1 = arith.constant 0 : i32
    return %c0_i32, %c0_i32_0 : i32, i32
  }
  func.func @transform_4(%arg0: i32) -> (i32, i32) {
    %c0_i32 = arith.constant 0 : i32
    %c0_i32_0 = arith.constant 0 : i32
    %c0_i32_1 = arith.constant 0 : i32
    return %c0_i32, %c0_i32_0 : i32, i32
  }
  func.func @transform_5(%arg0: i32) -> (i32, i32) {
    %c0_i32 = arith.constant 0 : i32
    %c0_i32_0 = arith.constant 0 : i32
    %c0_i32_1 = arith.constant 0 : i32
    return %c0_i32, %c0_i32_0 : i32, i32
  }
  func.func @transform_6(%arg0: i32) -> (i32, i32) {
    %c0_i32 = arith.constant 0 : i32
    %c0_i32_0 = arith.constant 0 : i32
    %c0_i32_1 = arith.constant 0 : i32
    return %c0_i32, %c0_i32_0 : i32, i32
  }
  func.func @transform_7(%arg0: i32) -> (i32, i32) {
    %c0_i32 = arith.constant 0 : i32
    %c0_i32_0 = arith.constant 0 : i32
    return %arg0, %c0_i32 : i32, i32
  }
  func.func @transform_8(%arg0: i32) -> (i32, i32) {
    %c0_i32 = arith.constant 0 : i32
    %c0_i32_0 = arith.constant 0 : i32
    return %arg0, %c0_i32 : i32, i32
  }
}

</mosaic_0001>

<llo_original>
// kernel: tpu_custom_call.1
$region0: #{tpu_custom_call.1}
  #allocation0 [shape = 'u32[]', space=smem, size = 0x4, offset = 0x4, fixed_abs, tag = 'smem constant byte address 0x4 - core index']
  #allocation1 [shape = 'u32[144,128]{1,0:T(1,128)}', space=vmem, size = 0x12000, scoped, tag = 'internal scratch']
  %s0 = inlined_call_operand.vmem [shape: f32[4,128], index: 0, kind: input, shape index: {}]
  %s1 = inlined_call_operand.vmem [shape: f32[128,196], index: 1, kind: input, shape index: {}]
  %s2 = inlined_call_operand.vmem [shape: f32[1,196], index: 2, kind: input, shape index: {}]
  %s3 = inlined_call_operand.vmem [shape: f32[128,128], index: 3, kind: input, shape index: {}]
  %s4 = inlined_call_operand.vmem [shape: f32[1,128], index: 4, kind: input, shape index: {}]
  %s5 = inlined_call_operand.vmem [shape: f32[128,136], index: 5, kind: input, shape index: {}]
  %s6 = inlined_call_operand.vmem [shape: f32[1,136], index: 6, kind: input, shape index: {}]
  %s7 = inlined_call_operand.hbm [shape: f32[4,136], index: 7, kind: output, shape index: {0}]
  %s8 = inlined_call_operand.hbm [shape: f32[4,68], index: 8, kind: output, shape index: {1}]
  %9 = xla_tuple %s7, %s8
  %s10 = sld [smem:[#allocation0]]
  $region46: #{tpu_custom_call.1} parent=0
    _
  %s12 = ssub.s32 1, %s10
  %s13 = scalar_select 0, %s12, %s10
  $region1: #{tpu_custom_call.1} parent=0
    #allocation2 [shape = 'u8[4096]{0}', space=vmem, size = 0x1000, scoped, tag = 'output window, operand 0, single buffered']
    #allocation3 [shape = 's32[1]{0}', space=sflag, size = 0x4, scoped, tag = 'scoped memory for tpu_custom_call.1']
    #allocation4 [shape = 'u8[2048]{0}', space=vmem, size = 0x800, scoped, tag = 'output window, operand 1, single buffered']
    #allocation5 [shape = 's32[1]{0}', space=sflag, size = 0x4, scoped, tag = 'scoped memory for tpu_custom_call.1']
    %14 = vsyncpa [#allocation3], 0
    %15 = vsyncpa [#allocation5], 0
    // Predicated region
    $region2: #{tpu_custom_call.1} parent=1 // pred_check
      _
    $region3: #{tpu_custom_call.1} parent=1 // pred_check_branch
      %17 = sbr.rel (0) target = $region5
    $region4: #{tpu_custom_call.1} parent=1 // pred_region
      _
    $region5: #{tpu_custom_call.1} parent=1 // pred_fallthru
      _
    // Predicated region
    $region6: #{tpu_custom_call.1} parent=1 // pred_check
      _
    $region7: #{tpu_custom_call.1} parent=1 // pred_check_branch
      %19 = sbr.rel (0) target = $region9
    $region8: #{tpu_custom_call.1} parent=1 // pred_region
      _
    $region9: #{tpu_custom_call.1} parent=1 // pred_fallthru
      _
    // Predicated region
    $region10: #{tpu_custom_call.1} parent=1 // pred_check
      _
    $region11: #{tpu_custom_call.1} parent=1 // pred_check_branch
      %21 = sbr.rel (0) target = $region13
    $region12: #{tpu_custom_call.1} parent=1 // pred_region
      _
    $region13: #{tpu_custom_call.1} parent=1 // pred_fallthru
      _
    // Predicated region
    $region14: #{tpu_custom_call.1} parent=1 // pred_check
      _
    $region15: #{tpu_custom_call.1} parent=1 // pred_check_branch
      %23 = sbr.rel (0) target = $region17
    $region16: #{tpu_custom_call.1} parent=1 // pred_region
      _
    $region17: #{tpu_custom_call.1} parent=1 // pred_fallthru
      _
    // Predicated region
    $region18: #{tpu_custom_call.1} parent=1 // pred_check
      _
    $region19: #{tpu_custom_call.1} parent=1 // pred_check_branch
      %25 = sbr.rel (0) target = $region21
    $region20: #{tpu_custom_call.1} parent=1 // pred_region
      _
    $region21: #{tpu_custom_call.1} parent=1 // pred_fallthru
      _
    // Predicated region
    $region22: #{tpu_custom_call.1} parent=1 // pred_check
      _
    $region23: #{tpu_custom_call.1} parent=1 // pred_check_branch
      %27 = sbr.rel (0) target = $region25
    $region24: #{tpu_custom_call.1} parent=1 // pred_region
      _
    $region25: #{tpu_custom_call.1} parent=1 // pred_fallthru
      _
    // Predicated region
    $region26: #{tpu_custom_call.1} parent=1 // pred_check
      _
    $region27: #{tpu_custom_call.1} parent=1 // pred_check_branch
      %29 = sbr.rel (0) target = $region29
    $region28: #{tpu_custom_call.1} parent=1 // pred_region
      _
    $region29: #{tpu_custom_call.1} parent=1 // pred_fallthru
      _
    %v30 = vld [vmem:[%s0] sm:$0xf]
    %v31 = vld [vmem:[%s1] sm:$0xff]
    %v32 = vld [vmem:[%s1 + $0x8] sm:$0xff]
    %v33 = vld [vmem:[%s1 + $0x10] sm:$0xff]
    %v34 = vld [vmem:[%s1 + $0x18] sm:$0xff]
    %v35 = vld [vmem:[%s1 + $0x20] sm:$0xff]
    %v36 = vld [vmem:[%s1 + $0x28] sm:$0xff]
    %v37 = vld [vmem:[%s1 + $0x30] sm:$0xff]
    %v38 = vld [vmem:[%s1 + $0x38] sm:$0xff]
    %v39 = vld [vmem:[%s1 + $0x40] sm:$0xff]
    %v40 = vld [vmem:[%s1 + $0x48] sm:$0xff]
    %v41 = vld [vmem:[%s1 + $0x50] sm:$0xff]
    %v42 = vld [vmem:[%s1 + $0x58] sm:$0xff]
    %v43 = vld [vmem:[%s1 + $0x60] sm:$0xff]
    %v44 = vld [vmem:[%s1 + $0x68] sm:$0xff]
    %v45 = vld [vmem:[%s1 + $0x70] sm:$0xff]
    %v46 = vld [vmem:[%s1 + $0x78] sm:$0xff]
    %v47 = vld [vmem:[%s1 + $0x80] sm:$0xff]
    %v48 = vld [vmem:[%s1 + $0x88] sm:$0xff]
    %v49 = vld [vmem:[%s1 + $0x90] sm:$0xff]
    %v50 = vld [vmem:[%s1 + $0x98] sm:$0xff]
    %v51 = vld [vmem:[%s1 + $0xa0] sm:$0xff]
    %v52 = vld [vmem:[%s1 + $0xa8] sm:$0xff]
    %v53 = vld [vmem:[%s1 + $0xb0] sm:$0xff]
    %v54 = vld [vmem:[%s1 + $0xb8] sm:$0xff]
    %v55 = vld [vmem:[%s1 + $0xc0] sm:$0xff]
    %v56 = vld [vmem:[%s1 + $0xc8] sm:$0xff]
    %v57 = vld [vmem:[%s1 + $0xd0] sm:$0xff]
    %v58 = vld [vmem:[%s1 + $0xd8] sm:$0xff]
    %v59 = vld [vmem:[%s1 + $0xe0] sm:$0xff]
    %v60 = vld [vmem:[%s1 + $0xe8] sm:$0xff]
    %v61 = vld [vmem:[%s1 + $0xf0] sm:$0xff]
    %v62 = vld [vmem:[%s1 + $0xf8] sm:$0xff]
    %v63 = vld [vmem:[%s2] sm:$0x3]
    %v65 = vlaneseq
    %v66 = vshrl.u32 %v65, 7
    %v67 = vsub.s32 0, %v66
    %v68 = vrot.slane %v63, %v67
    %v69 = vlaneseq
    %v70 = vshrl.u32 %v69, 7
    %v71 = vsub.s32 1, %v70
    %v72 = vrot.slane %v63, %v71
    %75 = vmatprep.subr.mxu0 %v62
    %76 = vmatpush1.msra.mxu0 %v61
    %77 = vmatprep.subr.mxu0 %v60
    %78 = vmatpush1.msra.mxu0 %v59
    %79 = vmatprep.subr.mxu0 %v58
    %80 = vmatpush1.msra.mxu0 %v57
    %81 = vmatprep.subr.mxu0 %v56
    %82 = vmatpush1.msra.mxu0 %v55
    %83 = vmatprep.subr.mxu0 %v54
    %84 = vmatpush1.msra.mxu0 %v53
    %85 = vmatprep.subr.mxu0 %v52
    %86 = vmatpush1.msra.mxu0 %v51
    %87 = vmatprep.subr.mxu0 %v50
    %88 = vmatpush1.msra.mxu0 %v49
    %89 = vmatprep.subr.mxu0 %v48
    %90 = vmatpush1.msra.mxu0 %v47
    %91 = vmatprep.subr.mxu0 %v46
    %92 = vmatpush1.msra.mxu0 %v45
    %93 = vmatprep.subr.mxu0 %v44
    %94 = vmatpush1.msra.mxu0 %v43
    %95 = vmatprep.subr.mxu0 %v42
    %96 = vmatpush1.msra.mxu0 %v41
    %97 = vmatprep.subr.mxu0 %v40
    %98 = vmatpush1.msra.mxu0 %v39
    %99 = vmatprep.subr.mxu0 %v38
    %100 = vmatpush1.msra.mxu0 %v37
    %101 = vmatprep.subr.mxu0 %v36
    %102 = vmatpush1.msra.mxu0 %v35
    %103 = vmatprep.subr.mxu0 %v34
    %104 = vmatpush1.msra.mxu0 %v33
    %105 = vmatprep.subr.mxu0 %v32
    %106 = vmatpush1.msra.mxu0 %v31
    %107 = vmatprep.subr.mxu0 0.0
    %108 = vmatpush2.msra.mxu0 0.0
    %109 = vmatprep.subr.mxu0 0.0
    %110 = vmatpush2.msra.mxu0 0.0
    %111 = vmatprep.subr.mxu0 0.0
    %112 = vmatpush2.msra.mxu0 0.0
    %113 = vmatprep.subr.mxu0 0.0
    %114 = vmatpush2.msra.mxu0 0.0
    %115 = vmatprep.subr.mxu0 0.0
    %116 = vmatpush2.msra.mxu0 0.0
    %117 = vmatprep.subr.mxu0 0.0
    %118 = vmatpush2.msra.mxu0 0.0
    %119 = vmatprep.subr.mxu0 0.0
    %120 = vmatpush2.msra.mxu0 0.0
    %121 = vmatprep.subr.mxu0 0.0
    %122 = vmatpush2.msra.mxu0 0.0
    %123 = vmatprep.subr.mxu0 0.0
    %124 = vmatpush2.msra.mxu0 0.0
    %125 = vmatprep.subr.mxu0 0.0
    %126 = vmatpush2.msra.mxu0 0.0
    %127 = vmatprep.subr.mxu0 0.0
    %128 = vmatpush2.msra.mxu0 0.0
    %129 = vmatprep.subr.mxu0 0.0
    %130 = vmatpush2.msra.mxu0 0.0
    %131 = vmatprep.subr.mxu0 0.0
    %132 = vmatpush2.msra.mxu0 0.0
    %133 = vmatprep.subr.mxu0 0.0
    %134 = vmatpush2.msra.mxu0 0.0
    %135 = vmatprep.subr.mxu0 0.0
    %136 = vmatpush2.msra.mxu0 0.0
    %137 = vmatprep.subr.mxu0 0.0
    %138 = vmatpush2.msra.mxu0 0.0
    %139 = vmatprep.mubr.f32.mxu0 0.0
    %140 = vmatmul.mubr.f32.gmra.mxu0 %v30
    %v141 = vpop.f32.mrf.mxu0
    %v142 = vadd.f32 %v68, %v141
    %v143 = vpop.f32.mrf.mxu0
    %v144 = vadd.f32 %v72, %v143
    %145 = vdwg.mxu0
    %v146 = vmax.f32 %v142, 0.0
    %v147 = vld [vmem:[%s3] sm:$0xff]
    %v148 = vld [vmem:[%s3 + $0x8] sm:$0xff]
    %v149 = vld [vmem:[%s3 + $0x10] sm:$0xff]
    %v150 = vld [vmem:[%s3 + $0x18] sm:$0xff]
    %v151 = vld [vmem:[%s3 + $0x20] sm:$0xff]
    %v152 = vld [vmem:[%s3 + $0x28] sm:$0xff]
    %v153 = vld [vmem:[%s3 + $0x30] sm:$0xff]
    %v154 = vld [vmem:[%s3 + $0x38] sm:$0xff]
    %v155 = vld [vmem:[%s3 + $0x40] sm:$0xff]
    %v156 = vld [vmem:[%s3 + $0x48] sm:$0xff]
    %v157 = vld [vmem:[%s3 + $0x50] sm:$0xff]
    %v158 = vld [vmem:[%s3 + $0x58] sm:$0xff]
    %v159 = vld [vmem:[%s3 + $0x60] sm:$0xff]
    %v160 = vld [vmem:[%s3 + $0x68] sm:$0xff]
    %v161 = vld [vmem:[%s3 + $0x70] sm:$0xff]
    %v162 = vld [vmem:[%s3 + $0x78] sm:$0xff]
    %v163 = vld [vmem:[%s4] sm:$0x1]
    %v165 = vlaneseq
    %v166 = vshrl.u32 %v165, 7
    %v167 = vsub.s32 0, %v166
    %v168 = vrot.slane %v163, %v167
    %170 = vmatprep.subr.mxu0 0.0
    %171 = vmatpush1.msra.mxu0 %v162
    %172 = vmatprep.subr.mxu0 0.0
    %173 = vmatpush1.msra.mxu0 %v161
    %174 = vmatprep.subr.mxu0 0.0
    %175 = vmatpush1.msra.mxu0 %v160
    %176 = vmatprep.subr.mxu0 0.0
    %177 = vmatpush1.msra.mxu0 %v159
    %178 = vmatprep.subr.mxu0 0.0
    %179 = vmatpush1.msra.mxu0 %v158
    %180 = vmatprep.subr.mxu0 0.0
    %181 = vmatpush1.msra.mxu0 %v157
    %182 = vmatprep.subr.mxu0 0.0
    %183 = vmatpush1.msra.mxu0 %v156
    %184 = vmatprep.subr.mxu0 0.0
    %185 = vmatpush1.msra.mxu0 %v155
    %186 = vmatprep.subr.mxu0 0.0
    %187 = vmatpush1.msra.mxu0 %v154
    %188 = vmatprep.subr.mxu0 0.0
    %189 = vmatpush1.msra.mxu0 %v153
    %190 = vmatprep.subr.mxu0 0.0
    %191 = vmatpush1.msra.mxu0 %v152
    %192 = vmatprep.subr.mxu0 0.0
    %193 = vmatpush1.msra.mxu0 %v151
    %194 = vmatprep.subr.mxu0 0.0
    %195 = vmatpush1.msra.mxu0 %v150
    %196 = vmatprep.subr.mxu0 0.0
    %197 = vmatpush1.msra.mxu0 %v149
    %198 = vmatprep.subr.mxu0 0.0
    %199 = vmatpush1.msra.mxu0 %v148
    %200 = vmatprep.subr.mxu0 0.0
    %201 = vmatpush1.msra.mxu0 %v147
    %202 = vmatprep.subr.mxu0 0.0
    %203 = vmatpush2.msra.mxu0 0.0
    %204 = vmatprep.subr.mxu0 0.0
    %205 = vmatpush2.msra.mxu0 0.0
    %206 = vmatprep.subr.mxu0 0.0
    %207 = vmatpush2.msra.mxu0 0.0
    %208 = vmatprep.subr.mxu0 0.0
    %209 = vmatpush2.msra.mxu0 0.0
    %210 = vmatprep.subr.mxu0 0.0
    %211 = vmatpush2.msra.mxu0 0.0
    %212 = vmatprep.subr.mxu0 0.0
    %213 = vmatpush2.msra.mxu0 0.0
    %214 = vmatprep.subr.mxu0 0.0
    %215 = vmatpush2.msra.mxu0 0.0
    %216 = vmatprep.subr.mxu0 0.0
    %217 = vmatpush2.msra.mxu0 0.0
    %218 = vmatprep.subr.mxu0 0.0
    %219 = vmatpush2.msra.mxu0 0.0
    %220 = vmatprep.subr.mxu0 0.0
    %221 = vmatpush2.msra.mxu0 0.0
    %222 = vmatprep.subr.mxu0 0.0
    %223 = vmatpush2.msra.mxu0 0.0
    %224 = vmatprep.subr.mxu0 0.0
    %225 = vmatpush2.msra.mxu0 0.0
    %226 = vmatprep.subr.mxu0 0.0
    %227 = vmatpush2.msra.mxu0 0.0
    %228 = vmatprep.subr.mxu0 0.0
    %229 = vmatpush2.msra.mxu0 0.0
    %230 = vmatprep.subr.mxu0 0.0
    %231 = vmatpush2.msra.mxu0 0.0
    %232 = vmatprep.subr.mxu0 0.0
    %233 = vmatpush2.msra.mxu0 0.0
    %234 = vmatprep.mubr.f32.mxu0 0.0
    %235 = vmatmul.mubr.f32.gmra.mxu0 %v146
    %v236 = vpop.f32.mrf.mxu0
    %v237 = vadd.f32 %v168, %v236
    %v238 = vpop.f32.mrf.mxu0
    %239 = vdwg.mxu0
    %v240 = vmax.f32 %v237, 0.0
    %v241 = vld [vmem:[%s5] sm:$0xff]
    %v242 = vld [vmem:[%s5 + $0x8] sm:$0xff]
    %v243 = vld [vmem:[%s5 + $0x10] sm:$0xff]
    %v244 = vld [vmem:[%s5 + $0x18] sm:$0xff]
    %v245 = vld [vmem:[%s5 + $0x20] sm:$0xff]
    %v246 = vld [vmem:[%s5 + $0x28] sm:$0xff]
    %v247 = vld [vmem:[%s5 + $0x30] sm:$0xff]
    %v248 = vld [vmem:[%s5 + $0x38] sm:$0xff]
    %v249 = vld [vmem:[%s5 + $0x40] sm:$0xff]
    %v250 = vld [vmem:[%s5 + $0x48] sm:$0xff]
    %v251 = vld [vmem:[%s5 + $0x50] sm:$0xff]
    %v252 = vld [vmem:[%s5 + $0x58] sm:$0xff]
    %v253 = vld [vmem:[%s5 + $0x60] sm:$0xff]
    %v254 = vld [vmem:[%s5 + $0x68] sm:$0xff]
    %v255 = vld [vmem:[%s5 + $0x70] sm:$0xff]
    %v256 = vld [vmem:[%s5 + $0x78] sm:$0xff]
    %v257 = vld [vmem:[%s5 + $0x80] sm:$0xff]
    %v258 = vld [vmem:[%s5 + $0x88] sm:$0xff]
    %v259 = vld [vmem:[%s5 + $0x90] sm:$0xff]
    %v260 = vld [vmem:[%s5 + $0x98] sm:$0xff]
    %v261 = vld [vmem:[%s5 + $0xa0] sm:$0xff]
    %v262 = vld [vmem:[%s5 + $0xa8] sm:$0xff]
    %v263 = vld [vmem:[%s5 + $0xb0] sm:$0xff]
    %v264 = vld [vmem:[%s5 + $0xb8] sm:$0xff]
    %v265 = vld [vmem:[%s5 + $0xc0] sm:$0xff]
    %v266 = vld [vmem:[%s5 + $0xc8] sm:$0xff]
    %v267 = vld [vmem:[%s5 + $0xd0] sm:$0xff]
    %v268 = vld [vmem:[%s5 + $0xd8] sm:$0xff]
    %v269 = vld [vmem:[%s5 + $0xe0] sm:$0xff]
    %v270 = vld [vmem:[%s5 + $0xe8] sm:$0xff]
    %v271 = vld [vmem:[%s5 + $0xf0] sm:$0xff]
    %v272 = vld [vmem:[%s5 + $0xf8] sm:$0xff]
    %v273 = vld [vmem:[%s6] sm:$0x3]
    %v275 = vlaneseq
    %v276 = vshrl.u32 %v275, 7
    %v277 = vsub.s32 0, %v276
    %v278 = vrot.slane %v273, %v277
    %v279 = vlaneseq
    %v280 = vshrl.u32 %v279, 7
    %v281 = vsub.s32 1, %v280
    %v282 = vrot.slane %v273, %v281
    %285 = vmatprep.subr.mxu0 %v272
    %286 = vmatpush1.msra.mxu0 %v271
    %287 = vmatprep.subr.mxu0 %v270
    %288 = vmatpush1.msra.mxu0 %v269
    %289 = vmatprep.subr.mxu0 %v268
    %290 = vmatpush1.msra.mxu0 %v267
    %291 = vmatprep.subr.mxu0 %v266
    %292 = vmatpush1.msra.mxu0 %v265
    %293 = vmatprep.subr.mxu0 %v264
    %294 = vmatpush1.msra.mxu0 %v263
    %295 = vmatprep.subr.mxu0 %v262
    %296 = vmatpush1.msra.mxu0 %v261
    %297 = vmatprep.subr.mxu0 %v260
    %298 = vmatpush1.msra.mxu0 %v259
    %299 = vmatprep.subr.mxu0 %v258
    %300 = vmatpush1.msra.mxu0 %v257
    %301 = vmatprep.subr.mxu0 %v256
    %302 = vmatpush1.msra.mxu0 %v255
    %303 = vmatprep.subr.mxu0 %v254
    %304 = vmatpush1.msra.mxu0 %v253
    %305 = vmatprep.subr.mxu0 %v252
    %306 = vmatpush1.msra.mxu0 %v251
    %307 = vmatprep.subr.mxu0 %v250
    %308 = vmatpush1.msra.mxu0 %v249
    %309 = vmatprep.subr.mxu0 %v248
    %310 = vmatpush1.msra.mxu0 %v247
    %311 = vmatprep.subr.mxu0 %v246
    %312 = vmatpush1.msra.mxu0 %v245
    %313 = vmatprep.subr.mxu0 %v244
    %314 = vmatpush1.msra.mxu0 %v243
    %315 = vmatprep.subr.mxu0 %v242
    %316 = vmatpush1.msra.mxu0 %v241
    %317 = vmatprep.subr.mxu0 0.0
    %318 = vmatpush2.msra.mxu0 0.0
    %319 = vmatprep.subr.mxu0 0.0
    %320 = vmatpush2.msra.mxu0 0.0
    %321 = vmatprep.subr.mxu0 0.0
    %322 = vmatpush2.msra.mxu0 0.0
    %323 = vmatprep.subr.mxu0 0.0
    %324 = vmatpush2.msra.mxu0 0.0
    %325 = vmatprep.subr.mxu0 0.0
    %326 = vmatpush2.msra.mxu0 0.0
    %327 = vmatprep.subr.mxu0 0.0
    %328 = vmatpush2.msra.mxu0 0.0
    %329 = vmatprep.subr.mxu0 0.0
    %330 = vmatpush2.msra.mxu0 0.0
    %331 = vmatprep.subr.mxu0 0.0
    %332 = vmatpush2.msra.mxu0 0.0
    %333 = vmatprep.subr.mxu0 0.0
    %334 = vmatpush2.msra.mxu0 0.0
    %335 = vmatprep.subr.mxu0 0.0
    %336 = vmatpush2.msra.mxu0 0.0
    %337 = vmatprep.subr.mxu0 0.0
    %338 = vmatpush2.msra.mxu0 0.0
    %339 = vmatprep.subr.mxu0 0.0
    %340 = vmatpush2.msra.mxu0 0.0
    %341 = vmatprep.subr.mxu0 0.0
    %342 = vmatpush2.msra.mxu0 0.0
    %343 = vmatprep.subr.mxu0 0.0
    %344 = vmatpush2.msra.mxu0 0.0
    %345 = vmatprep.subr.mxu0 0.0
    %346 = vmatpush2.msra.mxu0 0.0
    %347 = vmatprep.subr.mxu0 0.0
    %348 = vmatpush2.msra.mxu0 0.0
    %349 = vmatprep.mubr.f32.mxu0 0.0
    %350 = vmatmul.mubr.f32.gmra.mxu0 %v240
    %v351 = vpop.f32.mrf.mxu0
    %v352 = vadd.f32 %v278, %v351
    %v353 = vpop.f32.mrf.mxu0
    %v354 = vadd.f32 %v282, %v353
    %355 = vdwg.mxu0
    %v358 = vcombine.low %v352, %v354
    %vm360 = vcmask 1043456
    %vm361 = vcmask 64516
    %vm362 = vmor %vm361, %vm360
    %363 = vst.msk [vmem:[#allocation2] sm:$0xff] %vm362, %v358
    %vm364 = vcmask 551936
    %365 = vst.msk [vmem:[#allocation4] sm:$0xf] %vm364, %v144
    // Predicated region
    $region30: #{tpu_custom_call.1} parent=1 // pred_check
      _
    $region31: #{tpu_custom_call.1} parent=1 // pred_check_branch
      %367 = sbr.rel (0) target = $region33
    $region32: #{tpu_custom_call.1} parent=1 // pred_region
      %s369 = ssub.s32 128, 128
      %370 = vsyncadd [#allocation3], %s369
      %s372 = sshll.u32 [#allocation2], 4
      %s373 = int_to_ptr.vmem [resolvable:$true] %s372
      %375 = dma.vmem_to_hbm [thread:$0]  %s373, 128, %s7, [#allocation3]
    $region33: #{tpu_custom_call.1} parent=1 // pred_fallthru
      _
    // Predicated region
    $region34: #{tpu_custom_call.1} parent=1 // pred_check
      _
    $region35: #{tpu_custom_call.1} parent=1 // pred_check_branch
      %377 = sbr.rel (0) target = $region37
    $region36: #{tpu_custom_call.1} parent=1 // pred_region
      %s379 = ssub.s32 64, 64
      %380 = vsyncadd [#allocation5], %s379
      %s382 = sshll.u32 [#allocation4], 4
      %s383 = int_to_ptr.vmem [resolvable:$true] %s382
      %385 = dma.vmem_to_hbm [thread:$0]  %s383, 64, %s8, [#allocation5]
    $region37: #{tpu_custom_call.1} parent=1 // pred_fallthru
      _
    // Predicated region
    $region38: #{tpu_custom_call.1} parent=1 // pred_check
      _
    $region39: #{tpu_custom_call.1} parent=1 // pred_check_branch
      %387 = sbr.rel (0) target = $region41
    $region40: #{tpu_custom_call.1} parent=1 // pred_region
      %388 = dma.done [#allocation3], 128
    $region41: #{tpu_custom_call.1} parent=1 // pred_fallthru
      _
    // Predicated region
    $region42: #{tpu_custom_call.1} parent=1 // pred_check
      _
    $region43: #{tpu_custom_call.1} parent=1 // pred_check_branch
      %390 = sbr.rel (0) target = $region45
    $region44: #{tpu_custom_call.1} parent=1 // pred_region
      %391 = dma.done [#allocation5], 64
    $region45: #{tpu_custom_call.1} parent=1 // pred_fallthru
      _
    %392 = vsyncpa [#allocation3], 1
    %393 = vsyncpa [#allocation5], 1

</llo_original>
